<compile_context>
chip_gen: v7x
topology: tpu7x:2x2x1
jax: 0.10.0
libtpu: 0.0.40
codegen_flags: <defaults>
</compile_context>

<pallas_src>
import jax
import jax.numpy as jnp
from jax.experimental import pallas as pl
from jax.experimental.pallas import tpu as pltpu


def _linear_comp_kernel(z_ref, a_ref, wz_ref, wa_ref, b_ref, o_ref):
    # out = z @ W_z + a @ W_a + bias   (two MXU pushes, f32 accumulate)
    acc = jnp.dot(z_ref[...], wz_ref[...], preferred_element_type=jnp.float32)
    acc = acc + jnp.dot(a_ref[...], wa_ref[...], preferred_element_type=jnp.float32)
    o_ref[...] = (acc + b_ref[...]).astype(o_ref.dtype)


def prepare_linear_comp_params(params, compute_dtype=jnp.float32):
    """One-time fusion of the two nn.Linear layers into (W_z, W_a, bias).

    params: dict with
      wr/wt : (latent, latent + n_actions)  PyTorch nn.Linear weight layout,
              input column order = [z (latent) | actions (n_actions)]
      br/bt : (latent,)
    Note: pre-summing Wr_a + Wt_a and br + bt changes FP summation order
    slightly vs. the two-matmul reference (well within 1e-5 at f32).
    """
    latent = params["br"].shape[0]
    wr, wt = params["wr"], params["wt"]
    w_z = jnp.concatenate([wr[:, :latent].T, wt[:, :latent].T],
                          axis=0).astype(compute_dtype)        # (2*latent, latent)
    w_a = (wr[:, latent:] + wt[:, latent:]).T.astype(compute_dtype)  # (n_actions, latent)
    bias = (params["br"] + params["bt"]).reshape(1, latent).astype(jnp.float32)
    return {"w_z": w_z, "w_a": w_a, "bias": bias}


def linear_comp_forward(z, actions, fused, *, min_pallas_batch=256, max_tile=4096):
    """Pallas implementation of LinearComp.forward.

    z       : (B, 2*latent)
    actions : (B, n_actions)
    fused   : output of prepare_linear_comp_params (W_z / W_a / bias)
    """
    w_z, w_a, bias = fused["w_z"], fused["w_a"], fused["bias"]
    compute_dtype = w_z.dtype
    out_dtype = z.dtype
    B = z.shape[0]
    two_latent, latent = w_z.shape
    n_actions = w_a.shape[0]
    assert z.shape[1] == two_latent and actions.shape[1] == n_actions

    zc = z.astype(compute_dtype)
    ac = actions.astype(compute_dtype)

    # Small-B fallback: below threshold the custom-call dispatch + ~0.35us/step
    # pipeline overhead dwarfs the actual work; let XLA fuse the tiny matmul.
    if B < min_pallas_batch:
        acc = (jnp.dot(zc, w_z, preferred_element_type=jnp.float32)
               + jnp.dot(ac, w_a, preferred_element_type=jnp.float32)
               + bias)
        return acc.astype(out_dtype)

    # Tile selection: big tiles amortize per-step overhead; always aim for
    # >= 2 grid steps for non-trivial B so both v7x TensorCores get work.
    if B <= 8:
        tb = B                                              # single full-extent block
    else:
        tb = min(max_tile, ((pl.cdiv(B, 2) + 7) // 8) * 8)  # >=2 steps, 8-row granule
    grid = (pl.cdiv(B, tb),)

    bpe_in = jnp.dtype(compute_dtype).itemsize
    bpe_out = jnp.dtype(out_dtype).itemsize
    cost = pl.CostEstimate(
        flops=2 * B * latent * (two_latent + n_actions),
        transcendentals=0,
        bytes_accessed=(bpe_in * (B * two_latent + B * n_actions
                                  + two_latent * latent + n_actions * latent)
                        + 4 * latent
                        + bpe_out * B * latent),
    )

    out = pl.pallas_call(
        _linear_comp_kernel,
        out_shape=jax.ShapeDtypeStruct((B, latent), out_dtype),
        grid=grid,
        in_specs=[
            pl.BlockSpec((tb, two_latent), lambda i: (i, 0)),      # z tile
            pl.BlockSpec((tb, n_actions), lambda i: (i, 0)),       # actions tile
            pl.BlockSpec((two_latent, latent), lambda i: (0, 0)),  # W_z (resident)
            pl.BlockSpec((n_actions, latent), lambda i: (0, 0)),   # W_a (resident)
            pl.BlockSpec((1, latent), lambda i: (0, 0)),           # pre-summed bias
        ],
        out_specs=pl.BlockSpec((tb, latent), lambda i: (i, 0)),
        compiler_params=pltpu.CompilerParams(
            dimension_semantics=("parallel",)),
        cost_estimate=cost,
    )(zc, ac, w_z, w_a, bias)
    return out


def init_linear_comp_params(key, n_actions, latent_size, dtype=jnp.float32):
    """Deterministic init matching nn.Linear's U(-1/sqrt(fan_in), 1/sqrt(fan_in))."""
    d_in = n_actions + latent_size
    bound = 1.0 / jnp.sqrt(jnp.array(d_in, dtype=jnp.float32))
    k1, k2, k3, k4 = jax.random.split(key, 4)
    wr = jax.random.uniform(k1, (latent_size, d_in), dtype, -bound, bound)
    br = jax.random.uniform(k2, (latent_size,), dtype, -bound, bound)
    wt = jax.random.uniform(k3, (latent_size, d_in), dtype, -bound, bound)
    bt = jax.random.uniform(k4, (latent_size,), dtype, -bound, bound)
    return {"wr": wr, "br": br, "wt": wt, "bt": bt}


def _reference(z, actions, params):
    """Plain-JAX mirror of the PyTorch forward (two matmuls, original weights)."""
    latent = params["br"].shape[0]
    z3 = z.reshape(-1, 2, latent)
    xr = jnp.concatenate([z3[:, 0, :], actions], axis=1)
    xt = jnp.concatenate([z3[:, 1, :], actions], axis=1)
    return (xr @ params["wr"].T + params["br"]) + (xt @ params["wt"].T + params["bt"])


if __name__ == "__main__":
    n_actions = 4
    latent_size = 32

    key = jax.random.PRNGKey(0)
    kp, kz1, ka1, kz2, ka2 = jax.random.split(key, 5)
    params = init_linear_comp_params(kp, n_actions, latent_size)

    fused_f32 = jax.tree_util.tree_map(
        jax.block_until_ready, prepare_linear_comp_params(params))

    # 1) tiny batch forced through the Pallas kernel (single-step grid).
    B1 = 8
    z1 = jax.random.normal(kz1, (B1, 2 * latent_size), jnp.float32)
    a1 = jax.random.normal(ka1, (B1, n_actions), jnp.float32)
    out1 = jax.block_until_ready(
        linear_comp_forward(z1, a1, fused_f32, min_pallas_batch=0))
    ref1 = _reference(z1, a1, params)
    assert out1.shape == (B1, latent_size)
    assert jnp.allclose(out1, ref1, atol=1e-5, rtol=1e-5)

    # 2) larger batch: multi-tile "parallel" grid (2 steps -> both TCs on v7x).
    B2 = 2048
    z2 = jax.random.normal(kz2, (B2, 2 * latent_size), jnp.float32)
    a2 = jax.random.normal(ka2, (B2, n_actions), jnp.float32)
    out2 = jax.block_until_ready(linear_comp_forward(z2, a2, fused_f32))
    ref2 = _reference(z2, a2, params)
    assert out2.shape == (B2, latent_size)
    assert jnp.allclose(out2, ref2, atol=1e-5, rtol=1e-5)

    # 3) bf16 compute path (halved HBM traffic), f32 accumulate / f32 output.
    fused_bf16 = jax.tree_util.tree_map(
        jax.block_until_ready,
        prepare_linear_comp_params(params, compute_dtype=jnp.bfloat16))
    out3 = jax.block_until_ready(linear_comp_forward(z2, a2, fused_bf16))
    assert out3.dtype == jnp.float32
    assert jnp.allclose(out3, ref2, atol=1e-1, rtol=1e-1)

    # 4) small-B XLA fallback path (default threshold).
    out4 = jax.block_until_ready(linear_comp_forward(z1, a1, fused_f32))
    assert jnp.allclose(out4, ref1, atol=1e-5, rtol=1e-5)

    print("KERNEL_OK")
</pallas_src>

<mosaic_0001>
module attributes {stable_mosaic.version = 11 : i64} {
  func.func @_linear_comp_kernel(%arg0: i32, %arg1: memref<8x64xf32, #tpu.memory_space<vmem>>, %arg2: memref<8x4xf32, #tpu.memory_space<vmem>>, %arg3: memref<64x32xf32, #tpu.memory_space<vmem>>, %arg4: memref<4x32xf32, #tpu.memory_space<vmem>>, %arg5: memref<1x32xf32, #tpu.memory_space<vmem>>, %arg6: memref<8x32xf32, #tpu.memory_space<vmem>>) attributes {dimension_semantics = [#tpu.dimension_semantics<parallel>], iteration_bounds = array<i64: 1>, scalar_prefetch = 0 : i64, scratch_operands = 0 : i64, tpu.core_type = #tpu.core_type<tc>, window_params = [{transform_indices = @transform_0, window_bounds = array<i64: 8, 64>}, {transform_indices = @transform_1, window_bounds = array<i64: 8, 4>}, {pipeline_mode = #tpu.pipeline_mode<synchronous>, transform_indices = @transform_2, window_bounds = array<i64: 64, 32>}, {pipeline_mode = #tpu.pipeline_mode<synchronous>, transform_indices = @transform_3, window_bounds = array<i64: 4, 32>}, {pipeline_mode = #tpu.pipeline_mode<synchronous>, transform_indices = @transform_4, window_bounds = array<i64: 1, 32>}, {transform_indices = @transform_5, window_bounds = array<i64: 8, 32>}]} {
    %c0 = arith.constant 0 : index
    %c0_0 = arith.constant 0 : index
    %0 = vector.load %arg1[%c0, %c0_0] : memref<8x64xf32, #tpu.memory_space<vmem>>, vector<8x64xf32>
    %c0_1 = arith.constant 0 : index
    %c0_2 = arith.constant 0 : index
    %1 = vector.load %arg3[%c0_1, %c0_2] : memref<64x32xf32, #tpu.memory_space<vmem>>, vector<64x32xf32>
    %cst = arith.constant dense<0.000000e+00> : vector<8x32xf32>
    %2 = tpu.matmul %0, %1, %cst {dimension_numbers = #tpu.dot_dimension_numbers<[1], [0], [0], [1], [0, 0, 1, 1], [], []>} : vector<8x64xf32>, vector<64x32xf32>, vector<8x32xf32> -> vector<8x32xf32>
    %c0_3 = arith.constant 0 : index
    %c0_4 = arith.constant 0 : index
    %3 = vector.load %arg2[%c0_3, %c0_4] : memref<8x4xf32, #tpu.memory_space<vmem>>, vector<8x4xf32>
    %c0_5 = arith.constant 0 : index
    %c0_6 = arith.constant 0 : index
    %4 = vector.load %arg4[%c0_5, %c0_6] : memref<4x32xf32, #tpu.memory_space<vmem>>, vector<4x32xf32>
    %cst_7 = arith.constant dense<0.000000e+00> : vector<8x32xf32>
    %5 = tpu.matmul %3, %4, %cst_7 {dimension_numbers = #tpu.dot_dimension_numbers<[1], [0], [0], [1], [0, 0, 1, 1], [], []>} : vector<8x4xf32>, vector<4x32xf32>, vector<8x32xf32> -> vector<8x32xf32>
    %6 = arith.addf %2, %5 : vector<8x32xf32>
    %c0_8 = arith.constant 0 : index
    %c0_9 = arith.constant 0 : index
    %7 = vector.load %arg5[%c0_8, %c0_9] : memref<1x32xf32, #tpu.memory_space<vmem>>, vector<1x32xf32>
    %8 = vector.broadcast %7 : vector<1x32xf32> to vector<8x32xf32>
    %9 = arith.addf %6, %8 : vector<8x32xf32>
    %c0_10 = arith.constant 0 : index
    %c0_11 = arith.constant 0 : index
    %10 = vector.load %arg6[%c0_10, %c0_11] : memref<8x32xf32, #tpu.memory_space<vmem>>, vector<8x32xf32>
    tpu.vector_store %arg6[%c0_10, %c0_11], %9 {strides = array<i32>} : memref<8x32xf32, #tpu.memory_space<vmem>>, vector<8x32xf32>,
    return
  }
  func.func @transform_0(%arg0: i32) -> (i32, i32) {
    %c0_i32 = arith.constant 0 : i32
    %c0_i32_0 = arith.constant 0 : i32
    return %arg0, %c0_i32 : i32, i32
  }
  func.func @transform_1(%arg0: i32) -> (i32, i32) {
    %c0_i32 = arith.constant 0 : i32
    %c0_i32_0 = arith.constant 0 : i32
    return %arg0, %c0_i32 : i32, i32
  }
  func.func @transform_2(%arg0: i32) -> (i32, i32) {
    %c0_i32 = arith.constant 0 : i32
    %c0_i32_0 = arith.constant 0 : i32
    %c0_i32_1 = arith.constant 0 : i32
    return %c0_i32, %c0_i32_0 : i32, i32
  }
  func.func @transform_3(%arg0: i32) -> (i32, i32) {
    %c0_i32 = arith.constant 0 : i32
    %c0_i32_0 = arith.constant 0 : i32
    %c0_i32_1 = arith.constant 0 : i32
    return %c0_i32, %c0_i32_0 : i32, i32
  }
  func.func @transform_4(%arg0: i32) -> (i32, i32) {
    %c0_i32 = arith.constant 0 : i32
    %c0_i32_0 = arith.constant 0 : i32
    %c0_i32_1 = arith.constant 0 : i32
    return %c0_i32, %c0_i32_0 : i32, i32
  }
  func.func @transform_5(%arg0: i32) -> (i32, i32) {
    %c0_i32 = arith.constant 0 : i32
    %c0_i32_0 = arith.constant 0 : i32
    return %arg0, %c0_i32 : i32, i32
  }
}

</mosaic_0001>

<llo_original>
// kernel: tpu_custom_call.1
$region0: #{tpu_custom_call.1}
  #allocation0 [shape = 'u32[]', space=smem, size = 0x4, offset = 0x4, fixed_abs, tag = 'smem constant byte address 0x4 - core index']
  #allocation1 [shape = 'u32[144,128]{1,0:T(1,128)}', space=vmem, size = 0x12000, scoped, tag = 'internal scratch']
  %s0 = inlined_call_operand.vmem [shape: f32[8,64], index: 0, kind: input, shape index: {}]
  %s1 = inlined_call_operand.vmem [shape: f32[8,4], index: 1, kind: input, shape index: {}]
  %s2 = inlined_call_operand.vmem [shape: f32[64,32], index: 2, kind: input, shape index: {}]
  %s3 = inlined_call_operand.vmem [shape: f32[4,32], index: 3, kind: input, shape index: {}]
  %s4 = inlined_call_operand.vmem [shape: f32[1,32], index: 4, kind: input, shape index: {}]
  %s5 = inlined_call_operand.hbm [shape: f32[8,32], index: 5, kind: output, shape index: {}]
  %s6 = sld [smem:[#allocation0]]
  $region30: #{tpu_custom_call.1} parent=0
    _
  %s8 = ssub.s32 1, %s6
  %s9 = scalar_select 0, %s8, %s6
  $region1: #{tpu_custom_call.1} parent=0
    #allocation2 [shape = 'u8[4096]{0}', space=vmem, size = 0x1000, scoped, tag = 'output window, operand 0, single buffered']
    #allocation3 [shape = 's32[1]{0}', space=sflag, size = 0x4, scoped, tag = 'scoped memory for tpu_custom_call.1']
    %10 = vsyncpa [#allocation3], 0
    // Predicated region
    $region2: #{tpu_custom_call.1} parent=1 // pred_check
      _
    $region3: #{tpu_custom_call.1} parent=1 // pred_check_branch
      %12 = sbr.rel (0) target = $region5
    $region4: #{tpu_custom_call.1} parent=1 // pred_region
      _
    $region5: #{tpu_custom_call.1} parent=1 // pred_fallthru
      _
    // Predicated region
    $region6: #{tpu_custom_call.1} parent=1 // pred_check
      _
    $region7: #{tpu_custom_call.1} parent=1 // pred_check_branch
      %14 = sbr.rel (0) target = $region9
    $region8: #{tpu_custom_call.1} parent=1 // pred_region
      _
    $region9: #{tpu_custom_call.1} parent=1 // pred_fallthru
      _
    // Predicated region
    $region10: #{tpu_custom_call.1} parent=1 // pred_check
      _
    $region11: #{tpu_custom_call.1} parent=1 // pred_check_branch
      %16 = sbr.rel (0) target = $region13
    $region12: #{tpu_custom_call.1} parent=1 // pred_region
      _
    $region13: #{tpu_custom_call.1} parent=1 // pred_fallthru
      _
    // Predicated region
    $region14: #{tpu_custom_call.1} parent=1 // pred_check
      _
    $region15: #{tpu_custom_call.1} parent=1 // pred_check_branch
      %18 = sbr.rel (0) target = $region17
    $region16: #{tpu_custom_call.1} parent=1 // pred_region
      _
    $region17: #{tpu_custom_call.1} parent=1 // pred_fallthru
      _
    // Predicated region
    $region18: #{tpu_custom_call.1} parent=1 // pred_check
      _
    $region19: #{tpu_custom_call.1} parent=1 // pred_check_branch
      %20 = sbr.rel (0) target = $region21
    $region20: #{tpu_custom_call.1} parent=1 // pred_region
      _
    $region21: #{tpu_custom_call.1} parent=1 // pred_fallthru
      _
    %v21 = vld [vmem:[%s0] sm:$0xff]
    %v22 = vld [vmem:[%s2] sm:$0xff]
    %v23 = vld [vmem:[%s2 + $0x8] sm:$0xff]
    %v24 = vld [vmem:[%s2 + $0x10] sm:$0xff]
    %v25 = vld [vmem:[%s2 + $0x18] sm:$0xff]
    %v26 = vld [vmem:[%s2 + $0x20] sm:$0xff]
    %v27 = vld [vmem:[%s2 + $0x28] sm:$0xff]
    %v28 = vld [vmem:[%s2 + $0x30] sm:$0xff]
    %v29 = vld [vmem:[%s2 + $0x38] sm:$0xff]
    %v30 = vld [vmem:[%s1] sm:$0xff]
    %v31 = vld [vmem:[%s3] sm:$0xf]
    %vm32 = vcmask 31744
    %v34 = vsel %vm32, %v30, 0
    %vm36 = vcmask 1043456
    %v38 = vsel %vm36, %v31, 0
    %40 = vmatprep.subr.mxu0 0.0
    %41 = vmatpush1.msra.mxu0 %v38
    %42 = vmatprep.subr.mxu0 0.0
    %43 = vmatpush1.msra.mxu0 0.0
    %44 = vmatprep.subr.mxu0 0.0
    %45 = vmatpush1.msra.mxu0 0.0
    %46 = vmatprep.subr.mxu0 0.0
    %47 = vmatpush1.msra.mxu0 0.0
    %48 = vmatprep.subr.mxu0 0.0
    %49 = vmatpush1.msra.mxu0 0.0
    %50 = vmatprep.subr.mxu0 0.0
    %51 = vmatpush1.msra.mxu0 0.0
    %52 = vmatprep.subr.mxu0 0.0
    %53 = vmatpush1.msra.mxu0 0.0
    %54 = vmatprep.subr.mxu0 0.0
    %55 = vmatpush1.msra.mxu0 0.0
    %56 = vmatprep.subr.mxu0 0.0
    %57 = vmatpush1.msra.mxu0 0.0
    %58 = vmatprep.subr.mxu0 0.0
    %59 = vmatpush1.msra.mxu0 0.0
    %60 = vmatprep.subr.mxu0 0.0
    %61 = vmatpush1.msra.mxu0 0.0
    %62 = vmatprep.subr.mxu0 0.0
    %63 = vmatpush1.msra.mxu0 0.0
    %64 = vmatprep.subr.mxu0 0.0
    %65 = vmatpush1.msra.mxu0 0.0
    %66 = vmatprep.subr.mxu0 0.0
    %67 = vmatpush1.msra.mxu0 0.0
    %68 = vmatprep.subr.mxu0 0.0
    %69 = vmatpush1.msra.mxu0 0.0
    %70 = vmatprep.subr.mxu0 0.0
    %71 = vmatpush1.msra.mxu0 0.0
    %72 = vmatprep.subr.mxu0 0.0
    %73 = vmatpush1.msra.mxu0 0.0
    %74 = vmatprep.subr.mxu0 0.0
    %75 = vmatpush1.msra.mxu0 0.0
    %76 = vmatprep.subr.mxu0 0.0
    %77 = vmatpush1.msra.mxu0 0.0
    %78 = vmatprep.subr.mxu0 0.0
    %79 = vmatpush1.msra.mxu0 0.0
    %80 = vmatprep.subr.mxu0 0.0
    %81 = vmatpush1.msra.mxu0 0.0
    %82 = vmatprep.subr.mxu0 0.0
    %83 = vmatpush1.msra.mxu0 0.0
    %84 = vmatprep.subr.mxu0 0.0
    %85 = vmatpush1.msra.mxu0 0.0
    %86 = vmatprep.subr.mxu0 0.0
    %87 = vmatpush1.msra.mxu0 0.0
    %88 = vmatprep.subr.mxu0 0.0
    %89 = vmatpush1.msra.mxu0 0.0
    %90 = vmatprep.subr.mxu0 0.0
    %91 = vmatpush1.msra.mxu0 0.0
    %92 = vmatprep.subr.mxu0 0.0
    %93 = vmatpush1.msra.mxu0 0.0
    %94 = vmatprep.subr.mxu0 0.0
    %95 = vmatpush1.msra.mxu0 0.0
    %96 = vmatprep.subr.mxu0 0.0
    %97 = vmatpush1.msra.mxu0 0.0
    %98 = vmatprep.subr.mxu0 0.0
    %99 = vmatpush1.msra.mxu0 0.0
    %100 = vmatprep.subr.mxu0 0.0
    %101 = vmatpush1.msra.mxu0 0.0
    %102 = vmatprep.subr.mxu0 0.0
    %103 = vmatpush1.msra.mxu0 0.0
    %104 = vmatprep.mubr.f32.mxu0 0.0
    %105 = vmatmul.mubr.f32.gmra.mrb[0].mxu0 %v34
    %v106 = vpop.f32.mrb[0].mxu0
    %v107 = vadd.f32 0.0, %v106
    %v108 = vpop.f32.mrb[0].mxu0
    %109 = vdwg.mxu0
    %vm110 = vcmask 523264
    %v112 = vsel %vm110, %v21, 0
    %114 = vmatprep.subr.mxu0 0.0
    %115 = vmatpush1.msra.mxu0 %v22
    %116 = vmatprep.subr.mxu0 0.0
    %117 = vmatpush1.msra.mxu0 %v23
    %118 = vmatprep.subr.mxu0 0.0
    %119 = vmatpush1.msra.mxu0 %v24
    %120 = vmatprep.subr.mxu0 0.0
    %121 = vmatpush1.msra.mxu0 %v25
    %122 = vmatprep.subr.mxu0 0.0
    %123 = vmatpush1.msra.mxu0 %v26
    %124 = vmatprep.subr.mxu0 0.0
    %125 = vmatpush1.msra.mxu0 %v27
    %126 = vmatprep.subr.mxu0 0.0
    %127 = vmatpush1.msra.mxu0 %v28
    %128 = vmatprep.subr.mxu0 0.0
    %129 = vmatpush1.msra.mxu0 %v29
    %130 = vmatprep.subr.mxu0 0.0
    %131 = vmatpush1.msra.mxu0 0.0
    %132 = vmatprep.subr.mxu0 0.0
    %133 = vmatpush1.msra.mxu0 0.0
    %134 = vmatprep.subr.mxu0 0.0
    %135 = vmatpush1.msra.mxu0 0.0
    %136 = vmatprep.subr.mxu0 0.0
    %137 = vmatpush1.msra.mxu0 0.0
    %138 = vmatprep.subr.mxu0 0.0
    %139 = vmatpush1.msra.mxu0 0.0
    %140 = vmatprep.subr.mxu0 0.0
    %141 = vmatpush1.msra.mxu0 0.0
    %142 = vmatprep.subr.mxu0 0.0
    %143 = vmatpush1.msra.mxu0 0.0
    %144 = vmatprep.subr.mxu0 0.0
    %145 = vmatpush1.msra.mxu0 0.0
    %146 = vmatprep.subr.mxu0 0.0
    %147 = vmatpush1.msra.mxu0 0.0
    %148 = vmatprep.subr.mxu0 0.0
    %149 = vmatpush1.msra.mxu0 0.0
    %150 = vmatprep.subr.mxu0 0.0
    %151 = vmatpush1.msra.mxu0 0.0
    %152 = vmatprep.subr.mxu0 0.0
    %153 = vmatpush1.msra.mxu0 0.0
    %154 = vmatprep.subr.mxu0 0.0
    %155 = vmatpush1.msra.mxu0 0.0
    %156 = vmatprep.subr.mxu0 0.0
    %157 = vmatpush1.msra.mxu0 0.0
    %158 = vmatprep.subr.mxu0 0.0
    %159 = vmatpush1.msra.mxu0 0.0
    %160 = vmatprep.subr.mxu0 0.0
    %161 = vmatpush1.msra.mxu0 0.0
    %162 = vmatprep.subr.mxu0 0.0
    %163 = vmatpush1.msra.mxu0 0.0
    %164 = vmatprep.subr.mxu0 0.0
    %165 = vmatpush1.msra.mxu0 0.0
    %166 = vmatprep.subr.mxu0 0.0
    %167 = vmatpush1.msra.mxu0 0.0
    %168 = vmatprep.subr.mxu0 0.0
    %169 = vmatpush1.msra.mxu0 0.0
    %170 = vmatprep.subr.mxu0 0.0
    %171 = vmatpush1.msra.mxu0 0.0
    %172 = vmatprep.subr.mxu0 0.0
    %173 = vmatpush1.msra.mxu0 0.0
    %174 = vmatprep.subr.mxu0 0.0
    %175 = vmatpush1.msra.mxu0 0.0
    %176 = vmatprep.subr.mxu0 0.0
    %177 = vmatpush1.msra.mxu0 0.0
    %178 = vmatprep.mubr.f32.mxu0 0.0
    %179 = vmatmul.mubr.f32.gmra.mrb[0].mxu0 %v112
    %v180 = vpop.f32.mrb[0].mxu0
    %v181 = vadd.f32 %v107, %v180
    %v182 = vpop.f32.mrb[0].mxu0
    %183 = vdwg.mxu0
    %v184 = vld [vmem:[%s4] sm:$0x1]
    %v186 = vlaneseq
    %v187 = vshrl.u32 %v186, 7
    %v188 = vsub.s32 0, %v187
    %v189 = vrot.slane %v184, %v188
    %v191 = vadd.f32 %v181, %v189
    %vm192 = vcmask 261120
    %193 = vst.msk [vmem:[#allocation2] sm:$0xff] %vm192, %v191
    // Predicated region
    $region22: #{tpu_custom_call.1} parent=1 // pred_check
      _
    $region23: #{tpu_custom_call.1} parent=1 // pred_check_branch
      %195 = sbr.rel (0) target = $region25
    $region24: #{tpu_custom_call.1} parent=1 // pred_region
      %s197 = ssub.s32 128, 128
      %198 = vsyncadd [#allocation3], %s197
      %s200 = sshll.u32 [#allocation2], 4
      %s201 = int_to_ptr.vmem [resolvable:$true] %s200
      %203 = dma.vmem_to_hbm [thread:$0]  %s201, 128, %s5, [#allocation3]
    $region25: #{tpu_custom_call.1} parent=1 // pred_fallthru
      _
    // Predicated region
    $region26: #{tpu_custom_call.1} parent=1 // pred_check
      _
    $region27: #{tpu_custom_call.1} parent=1 // pred_check_branch
      %205 = sbr.rel (0) target = $region29
    $region28: #{tpu_custom_call.1} parent=1 // pred_region
      %206 = dma.done [#allocation3], 128
    $region29: #{tpu_custom_call.1} parent=1 // pred_fallthru
      _
    %207 = vsyncpa [#allocation3], 1

</llo_original>
